<compile_context>
chip_gen: v6e
topology: v6e:2x2x1
jax: 0.10.0
libtpu: 0.0.40
codegen_flags: <defaults>
</compile_context>

<pallas_src>
import functools

import jax
import jax.numpy as jnp
from jax.experimental import pallas as pl
from jax.experimental.pallas import tpu as pltpu

OUT_ROWS = 8  # fc4 has 2 outputs; pad to one sublane in the transposed layout


def _round_up(a, b):
    return (a + b - 1) // b * b


# ---------------------------------------------------------------------------
# Pass 1: per-tile BatchNorm partial sums of h = relu(x @ W1^T).
# h is NOT written to HBM; it is recomputed in pass 2.
# ---------------------------------------------------------------------------
def fc1_stats_kernel(x_ref, w1t_ref, psum_ref, psq_ref):
    h = jnp.dot(x_ref[...], w1t_ref[...], preferred_element_type=jnp.float32)
    h = jnp.maximum(h, 0.0)                                     # (TN, F)
    psum_ref[...] = jnp.sum(h, axis=0, keepdims=True)           # (1, F)
    psq_ref[...] = jnp.sum(h * h, axis=0, keepdims=True)        # (1, F)


# ---------------------------------------------------------------------------
# Pass 2: recompute fc1, folded BN affine (+1/sqrt(F) and alpha fold),
# knn(fc2), ReLU, fc4 -- emitted transposed/compact as an (8, TN) tile.
#   hs = h*g + c ; xx = sum(hs^2) ; m = hs @ W2t_fold
#   a  = relu(cst - a_xx*xx + m) ; out^T = W4p @ a^T
# ---------------------------------------------------------------------------
def fused_fwd_kernel(x_ref, w1t_ref, g_ref, c_ref, w2t_ref, cst_ref, w4p_ref,
                     o_ref, *, a_xx):
    h = jnp.dot(x_ref[...], w1t_ref[...], preferred_element_type=jnp.float32)
    h = jnp.maximum(h, 0.0)                                     # (TN, F)
    hs = h * g_ref[...] + c_ref[...]                            # BN fold
    xx = jnp.sum(hs * hs, axis=1, keepdims=True)                # (TN, 1)
    if a_xx != 1.0:                                             # compile-time
        xx = a_xx * xx
    m = jnp.dot(hs, w2t_ref[...], preferred_element_type=jnp.float32)
    a = jnp.maximum(cst_ref[...] - xx + m, 0.0)                 # (TN, F)
    # out^T = W4p (8,F) @ a^T : contract last dims (q @ k^T pattern, MXU-native)
    o_ref[...] = jax.lax.dot_general(
        w4p_ref[...], a, dimension_numbers=(((1,), (1,)), ((), ())),
        preferred_element_type=jnp.float32)                     # (8, TN)


@functools.partial(jax.jit, static_argnames=("alpha", "r2", "eps", "tile_n"))
def net3_forward(x, w1, w2, w4, alpha, r2, *, eps=1e-5, tile_n=8192):
    alpha = float(alpha)
    r2 = float(r2)
    x = x.astype(jnp.float32)
    n, d = x.shape
    f = w1.shape[0]

    # --- batch tiling: big lane-dense tiles; >=2 (even) tiles for large
    # batches so the "parallel" axis shards across v7x's two TensorCores.
    if n <= 1024:
        tn = _round_up(n, 8)
    else:
        num_tiles = max(2, _round_up(pl.cdiv(n, tile_n), 2))
        tn = _round_up(pl.cdiv(n, num_tiles), 128)
    n_pad = _round_up(n, tn)
    grid_n = n_pad // tn
    if n_pad != n:
        # Zero rows: fc1 has no bias, so relu(0 @ W1^T) = 0 and padded rows
        # contribute nothing to the BN partial sums; garbage output columns
        # beyond n are sliced off in the wrapper.
        x = jnp.pad(x, ((0, n_pad - n), (0, 0)))

    w1t = w1.T.astype(jnp.float32)                              # (D, F)

    cparams = pltpu.CompilerParams(dimension_semantics=("parallel",),
                                   vmem_limit_bytes=32 * 1024 * 1024)

    # ---------------- pass 1: fc1 + relu -> BN partial sums ----------------
    psum, psq = pl.pallas_call(
        fc1_stats_kernel,
        out_shape=(
            jax.ShapeDtypeStruct((grid_n, 1, f), jnp.float32),
            jax.ShapeDtypeStruct((grid_n, 1, f), jnp.float32),
        ),
        grid_spec=pltpu.PrefetchScalarGridSpec(
            num_scalar_prefetch=0,
            grid=(grid_n,),
            in_specs=[
                pl.BlockSpec((tn, d), lambda i: (i, 0)),        # x tile
                pl.BlockSpec((d, f), lambda i: (0, 0)),         # W1^T resident
            ],
            out_specs=[
                pl.BlockSpec((None, 1, f), lambda i: (i, 0, 0)),
                pl.BlockSpec((None, 1, f), lambda i: (i, 0, 0)),
            ],
        ),
        compiler_params=cparams,
        cost_estimate=pl.CostEstimate(
            flops=2 * n_pad * d * f + 3 * n_pad * f,
            transcendentals=0,
            bytes_accessed=4 * (n_pad * d + d * f + 2 * grid_n * f)),
    )(x, w1t)

    # --- fold BN (train-mode batch stats, biased var), 1/sqrt(F) and alpha
    #     into per-feature (g, c); fold the knn 2x into W2^T.
    # NOTE: one-pass E[h^2]-E[h]^2 in f32 (clamped at 0); acceptable here but
    # can lose precision when per-feature std << mean.
    mean = jnp.sum(psum, axis=(0, 1)) / n
    var = jnp.maximum(jnp.sum(psq, axis=(0, 1)) / n - mean * mean, 0.0)
    scale = jax.lax.rsqrt(var + eps) / jnp.sqrt(jnp.float32(f))
    if alpha > 0.0:
        s = alpha ** 0.5      # xx and m both pick up alpha / 2 via scaling
        a_xx = 1.0
    else:                     # fallback: keep alpha on xx as a compile const
        s = 1.0
        a_xx = alpha
    g = (scale * s).reshape(1, f)
    c = (-mean * scale * s).reshape(1, f)
    w2t = (w2.T.astype(jnp.float32)) * (2.0 / s)                # (F, F)
    mm = jnp.sum(w2.astype(jnp.float32) ** 2, axis=1)           # (F,)
    cst = (alpha * (r2 - mm)).reshape(1, f)

    w4p = jnp.zeros((OUT_ROWS, f), jnp.float32).at[:2, :].set(
        w4.astype(jnp.float32))                                 # (8, F)

    # ------ pass 2: recompute fc1, BN fold, knn(fc2), relu, fc4^T ------
    out_t = pl.pallas_call(
        functools.partial(fused_fwd_kernel, a_xx=a_xx),
        out_shape=jax.ShapeDtypeStruct((OUT_ROWS, n_pad), jnp.float32),
        grid_spec=pltpu.PrefetchScalarGridSpec(
            num_scalar_prefetch=0,
            grid=(grid_n,),
            in_specs=[
                pl.BlockSpec((tn, d), lambda i: (i, 0)),        # x tile
                pl.BlockSpec((d, f), lambda i: (0, 0)),         # W1^T
                pl.BlockSpec((1, f), lambda i: (0, 0)),         # g
                pl.BlockSpec((1, f), lambda i: (0, 0)),         # c
                pl.BlockSpec((f, f), lambda i: (0, 0)),         # (2/s)*W2^T
                pl.BlockSpec((1, f), lambda i: (0, 0)),         # cst
                pl.BlockSpec((OUT_ROWS, f), lambda i: (0, 0)),  # W4 padded
            ],
            out_specs=pl.BlockSpec((OUT_ROWS, tn), lambda i: (0, i)),
        ),
        compiler_params=cparams,
        cost_estimate=pl.CostEstimate(
            flops=2 * n_pad * f * (d + f + OUT_ROWS) + 8 * n_pad * f,
            transcendentals=0,
            bytes_accessed=4 * (n_pad * d + d * f + f * f
                                + (OUT_ROWS + 3) * f + OUT_ROWS * n_pad)),
    )(x, w1t, g, c, w2t, cst, w4p)

    return out_t[:2, :n].T


def net3_reference(x, w1, w2, w4, alpha, r2, eps=1e-5):
    h = jnp.maximum(x @ w1.T, 0.0)
    mean = jnp.mean(h, axis=0)
    var = jnp.mean((h - mean) ** 2, axis=0)   # biased var (train-mode BN)
    hs = (h - mean) / jnp.sqrt(var + eps)
    hs = hs / jnp.sqrt(jnp.float32(h.shape[1]))
    xx = jnp.sum(hs * hs, axis=1, keepdims=True)
    mm = jnp.sum(w2 * w2, axis=1, keepdims=True).T
    z = alpha * (r2 - mm - xx) + 2.0 * (hs @ w2.T)
    return jnp.maximum(z, 0.0) @ w4.T


if __name__ == "__main__":
    # Small shapes consistent with the module: x is (N, inputs)
    N, INPUTS, FEATURES = 8, 32, 16
    key = jax.random.PRNGKey(0)
    kx, kw1, kw2, kw4 = jax.random.split(key, 4)

    bound1 = 1.0 / jnp.sqrt(jnp.float32(INPUTS))
    bound2 = 1.0 / jnp.sqrt(jnp.float32(FEATURES))
    x = jax.random.normal(kx, (N, INPUTS), jnp.float32)
    w1 = jax.random.uniform(kw1, (FEATURES, INPUTS), jnp.float32, -bound1, bound1)
    w2 = jax.random.uniform(kw2, (FEATURES, FEATURES), jnp.float32, -bound2, bound2)
    w4 = jax.random.uniform(kw4, (2, FEATURES), jnp.float32, -bound2, bound2)

    alpha = 0.5
    r2 = 2.0

    out = net3_forward(x, w1, w2, w4, alpha, r2)
    out = jax.block_until_ready(out)

    ref = net3_reference(x, w1, w2, w4, alpha, r2)
    assert out.shape == (N, 2)
    assert jnp.allclose(out, ref, atol=1e-4, rtol=1e-4), "mismatch vs reference"
    print("KERNEL_OK")
</pallas_src>

<mosaic_0001>
module attributes {stable_mosaic.version = 11 : i64} {
  func.func @fc1_stats_kernel(%arg0: i32, %arg1: memref<8x32xf32, #tpu.memory_space<vmem>>, %arg2: memref<32x16xf32, #tpu.memory_space<vmem>>, %arg3: memref<1x1x16xf32, #tpu.memory_space<vmem>>, %arg4: memref<1x1x16xf32, #tpu.memory_space<vmem>>) attributes {dimension_semantics = [#tpu.dimension_semantics<parallel>], iteration_bounds = array<i64: 1>, scalar_prefetch = 0 : i64, scratch_operands = 0 : i64, tpu.core_type = #tpu.core_type<tc>, window_params = [{transform_indices = @transform_0, window_bounds = array<i64: 8, 32>}, {pipeline_mode = #tpu.pipeline_mode<synchronous>, transform_indices = @transform_1, window_bounds = array<i64: 32, 16>}, {transform_indices = @transform_2, window_bounds = array<i64: 1, 1, 16>}, {transform_indices = @transform_3, window_bounds = array<i64: 1, 1, 16>}]} {
    %c0 = arith.constant 0 : index
    %c0_0 = arith.constant 0 : index
    %0 = vector.load %arg1[%c0, %c0_0] : memref<8x32xf32, #tpu.memory_space<vmem>>, vector<8x32xf32>
    %c0_1 = arith.constant 0 : index
    %c0_2 = arith.constant 0 : index
    %1 = vector.load %arg2[%c0_1, %c0_2] : memref<32x16xf32, #tpu.memory_space<vmem>>, vector<32x16xf32>
    %cst = arith.constant dense<0.000000e+00> : vector<8x16xf32>
    %2 = tpu.matmul %0, %1, %cst {dimension_numbers = #tpu.dot_dimension_numbers<[1], [0], [0], [1], [0, 0, 1, 1], [], []>} : vector<8x32xf32>, vector<32x16xf32>, vector<8x16xf32> -> vector<8x16xf32>
    %cst_3 = arith.constant 0.000000e+00 : f32
    %3 = vector.broadcast %cst_3 : f32 to vector<8x16xf32>
    %4 = arith.maximumf %2, %3 : vector<8x16xf32>
    %cst_4 = arith.constant dense<0.000000e+00> : vector<16xf32>
    %5 = vector.multi_reduction <add>, %4, %cst_4 [0] : vector<8x16xf32> to vector<16xf32>
    %6 = vector.shape_cast %5 : vector<16xf32> to vector<1x16xf32>
    %c0_5 = arith.constant 0 : index
    %c0_6 = arith.constant 0 : index
    %c0_7 = arith.constant 0 : index
    %7 = vector.load %arg3[%c0_5, %c0_6, %c0_7] : memref<1x1x16xf32, #tpu.memory_space<vmem>>, vector<1x1x16xf32>
    %8 = vector.shape_cast %7 : vector<1x1x16xf32> to vector<1x16xf32>
    %9 = vector.shape_cast %6 : vector<1x16xf32> to vector<1x1x16xf32>
    tpu.vector_store %arg3[%c0_5, %c0_6, %c0_7], %9 {strides = array<i32>} : memref<1x1x16xf32, #tpu.memory_space<vmem>>, vector<1x1x16xf32>,
    %10 = arith.mulf %4, %4 : vector<8x16xf32>
    %cst_8 = arith.constant dense<0.000000e+00> : vector<16xf32>
    %11 = vector.multi_reduction <add>, %10, %cst_8 [0] : vector<8x16xf32> to vector<16xf32>
    %12 = vector.shape_cast %11 : vector<16xf32> to vector<1x16xf32>
    %c0_9 = arith.constant 0 : index
    %c0_10 = arith.constant 0 : index
    %c0_11 = arith.constant 0 : index
    %13 = vector.load %arg4[%c0_9, %c0_10, %c0_11] : memref<1x1x16xf32, #tpu.memory_space<vmem>>, vector<1x1x16xf32>
    %14 = vector.shape_cast %13 : vector<1x1x16xf32> to vector<1x16xf32>
    %15 = vector.shape_cast %12 : vector<1x16xf32> to vector<1x1x16xf32>
    tpu.vector_store %arg4[%c0_9, %c0_10, %c0_11], %15 {strides = array<i32>} : memref<1x1x16xf32, #tpu.memory_space<vmem>>, vector<1x1x16xf32>,
    return
  }
  func.func @transform_0(%arg0: i32) -> (i32, i32) {
    %c0_i32 = arith.constant 0 : i32
    %c0_i32_0 = arith.constant 0 : i32
    return %arg0, %c0_i32 : i32, i32
  }
  func.func @transform_1(%arg0: i32) -> (i32, i32) {
    %c0_i32 = arith.constant 0 : i32
    %c0_i32_0 = arith.constant 0 : i32
    %c0_i32_1 = arith.constant 0 : i32
    return %c0_i32, %c0_i32_0 : i32, i32
  }
  func.func @transform_2(%arg0: i32) -> (i32, i32, i32) {
    %c0_i32 = arith.constant 0 : i32
    %c0_i32_0 = arith.constant 0 : i32
    %c0_i32_1 = arith.constant 0 : i32
    return %arg0, %c0_i32, %c0_i32_0 : i32, i32, i32
  }
  func.func @transform_3(%arg0: i32) -> (i32, i32, i32) {
    %c0_i32 = arith.constant 0 : i32
    %c0_i32_0 = arith.constant 0 : i32
    %c0_i32_1 = arith.constant 0 : i32
    return %arg0, %c0_i32, %c0_i32_0 : i32, i32, i32
  }
}

module attributes {stable_mosaic.version = 11 : i64} {
  func.func @fused_fwd_kernel(%arg0: i32, %arg1: memref<8x32xf32, #tpu.memory_space<vmem>>, %arg2: memref<32x16xf32, #tpu.memory_space<vmem>>, %arg3: memref<1x16xf32, #tpu.memory_space<vmem>>, %arg4: memref<1x16xf32, #tpu.memory_space<vmem>>, %arg5: memref<16x16xf32, #tpu.memory_space<vmem>>, %arg6: memref<1x16xf32, #tpu.memory_space<vmem>>, %arg7: memref<8x16xf32, #tpu.memory_space<vmem>>, %arg8: memref<8x8xf32, #tpu.memory_space<vmem>>) attributes {dimension_semantics = [#tpu.dimension_semantics<parallel>], iteration_bounds = array<i64: 1>, scalar_prefetch = 0 : i64, scratch_operands = 0 : i64, tpu.core_type = #tpu.core_type<tc>, window_params = [{transform_indices = @transform_0, window_bounds = array<i64: 8, 32>}, {pipeline_mode = #tpu.pipeline_mode<synchronous>, transform_indices = @transform_1, window_bounds = array<i64: 32, 16>}, {pipeline_mode = #tpu.pipeline_mode<synchronous>, transform_indices = @transform_2, window_bounds = array<i64: 1, 16>}, {pipeline_mode = #tpu.pipeline_mode<synchronous>, transform_indices = @transform_3, window_bounds = array<i64: 1, 16>}, {pipeline_mode = #tpu.pipeline_mode<synchronous>, transform_indices = @transform_4, window_bounds = array<i64: 16, 16>}, {pipeline_mode = #tpu.pipeline_mode<synchronous>, transform_indices = @transform_5, window_bounds = array<i64: 1, 16>}, {pipeline_mode = #tpu.pipeline_mode<synchronous>, transform_indices = @transform_6, window_bounds = array<i64: 8, 16>}, {transform_indices = @transform_7, window_bounds = array<i64: 8, 8>}]} {
    %c0 = arith.constant 0 : index
    %c0_0 = arith.constant 0 : index
    %0 = vector.load %arg1[%c0, %c0_0] : memref<8x32xf32, #tpu.memory_space<vmem>>, vector<8x32xf32>
    %c0_1 = arith.constant 0 : index
    %c0_2 = arith.constant 0 : index
    %1 = vector.load %arg2[%c0_1, %c0_2] : memref<32x16xf32, #tpu.memory_space<vmem>>, vector<32x16xf32>
    %cst = arith.constant dense<0.000000e+00> : vector<8x16xf32>
    %2 = tpu.matmul %0, %1, %cst {dimension_numbers = #tpu.dot_dimension_numbers<[1], [0], [0], [1], [0, 0, 1, 1], [], []>} : vector<8x32xf32>, vector<32x16xf32>, vector<8x16xf32> -> vector<8x16xf32>
    %cst_3 = arith.constant 0.000000e+00 : f32
    %3 = vector.broadcast %cst_3 : f32 to vector<8x16xf32>
    %4 = arith.maximumf %2, %3 : vector<8x16xf32>
    %c0_4 = arith.constant 0 : index
    %c0_5 = arith.constant 0 : index
    %5 = vector.load %arg3[%c0_4, %c0_5] : memref<1x16xf32, #tpu.memory_space<vmem>>, vector<1x16xf32>
    %6 = vector.broadcast %5 : vector<1x16xf32> to vector<8x16xf32>
    %7 = arith.mulf %4, %6 : vector<8x16xf32>
    %c0_6 = arith.constant 0 : index
    %c0_7 = arith.constant 0 : index
    %8 = vector.load %arg4[%c0_6, %c0_7] : memref<1x16xf32, #tpu.memory_space<vmem>>, vector<1x16xf32>
    %9 = vector.broadcast %8 : vector<1x16xf32> to vector<8x16xf32>
    %10 = arith.addf %7, %9 : vector<8x16xf32>
    %11 = arith.mulf %10, %10 : vector<8x16xf32>
    %cst_8 = arith.constant dense<0.000000e+00> : vector<8xf32>
    %12 = vector.multi_reduction <add>, %11, %cst_8 [1] : vector<8x16xf32> to vector<8xf32>
    %13 = vector.shape_cast %12 : vector<8xf32> to vector<8x1xf32>
    %c0_9 = arith.constant 0 : index
    %c0_10 = arith.constant 0 : index
    %14 = vector.load %arg5[%c0_9, %c0_10] : memref<16x16xf32, #tpu.memory_space<vmem>>, vector<16x16xf32>
    %cst_11 = arith.constant dense<0.000000e+00> : vector<8x16xf32>
    %15 = tpu.matmul %10, %14, %cst_11 {dimension_numbers = #tpu.dot_dimension_numbers<[1], [0], [0], [1], [0, 0, 1, 1], [], []>} : vector<8x16xf32>, vector<16x16xf32>, vector<8x16xf32> -> vector<8x16xf32>
    %c0_12 = arith.constant 0 : index
    %c0_13 = arith.constant 0 : index
    %16 = vector.load %arg6[%c0_12, %c0_13] : memref<1x16xf32, #tpu.memory_space<vmem>>, vector<1x16xf32>
    %17 = vector.broadcast %16 : vector<1x16xf32> to vector<8x16xf32>
    %18 = vector.broadcast %13 : vector<8x1xf32> to vector<8x16xf32>
    %19 = arith.subf %17, %18 : vector<8x16xf32>
    %20 = arith.addf %19, %15 : vector<8x16xf32>
    %cst_14 = arith.constant 0.000000e+00 : f32
    %21 = vector.broadcast %cst_14 : f32 to vector<8x16xf32>
    %22 = arith.maximumf %20, %21 : vector<8x16xf32>
    %c0_15 = arith.constant 0 : index
    %c0_16 = arith.constant 0 : index
    %23 = vector.load %arg7[%c0_15, %c0_16] : memref<8x16xf32, #tpu.memory_space<vmem>>, vector<8x16xf32>
    %cst_17 = arith.constant dense<0.000000e+00> : vector<8x8xf32>
    %24 = tpu.matmul %23, %22, %cst_17 {dimension_numbers = #tpu.dot_dimension_numbers<[1], [1], [0], [0], [0, 0, 1, 0], [], []>} : vector<8x16xf32>, vector<8x16xf32>, vector<8x8xf32> -> vector<8x8xf32>
    %c0_18 = arith.constant 0 : index
    %c0_19 = arith.constant 0 : index
    %25 = vector.load %arg8[%c0_18, %c0_19] : memref<8x8xf32, #tpu.memory_space<vmem>>, vector<8x8xf32>
    tpu.vector_store %arg8[%c0_18, %c0_19], %24 {strides = array<i32>} : memref<8x8xf32, #tpu.memory_space<vmem>>, vector<8x8xf32>,
    return
  }
  func.func @transform_0(%arg0: i32) -> (i32, i32) {
    %c0_i32 = arith.constant 0 : i32
    %c0_i32_0 = arith.constant 0 : i32
    return %arg0, %c0_i32 : i32, i32
  }
  func.func @transform_1(%arg0: i32) -> (i32, i32) {
    %c0_i32 = arith.constant 0 : i32
    %c0_i32_0 = arith.constant 0 : i32
    %c0_i32_1 = arith.constant 0 : i32
    return %c0_i32, %c0_i32_0 : i32, i32
  }
  func.func @transform_2(%arg0: i32) -> (i32, i32) {
    %c0_i32 = arith.constant 0 : i32
    %c0_i32_0 = arith.constant 0 : i32
    %c0_i32_1 = arith.constant 0 : i32
    return %c0_i32, %c0_i32_0 : i32, i32
  }
  func.func @transform_3(%arg0: i32) -> (i32, i32) {
    %c0_i32 = arith.constant 0 : i32
    %c0_i32_0 = arith.constant 0 : i32
    %c0_i32_1 = arith.constant 0 : i32
    return %c0_i32, %c0_i32_0 : i32, i32
  }
  func.func @transform_4(%arg0: i32) -> (i32, i32) {
    %c0_i32 = arith.constant 0 : i32
    %c0_i32_0 = arith.constant 0 : i32
    %c0_i32_1 = arith.constant 0 : i32
    return %c0_i32, %c0_i32_0 : i32, i32
  }
  func.func @transform_5(%arg0: i32) -> (i32, i32) {
    %c0_i32 = arith.constant 0 : i32
    %c0_i32_0 = arith.constant 0 : i32
    %c0_i32_1 = arith.constant 0 : i32
    return %c0_i32, %c0_i32_0 : i32, i32
  }
  func.func @transform_6(%arg0: i32) -> (i32, i32) {
    %c0_i32 = arith.constant 0 : i32
    %c0_i32_0 = arith.constant 0 : i32
    %c0_i32_1 = arith.constant 0 : i32
    return %c0_i32, %c0_i32_0 : i32, i32
  }
  func.func @transform_7(%arg0: i32) -> (i32, i32) {
    %c0_i32 = arith.constant 0 : i32
    %c0_i32_0 = arith.constant 0 : i32
    return %c0_i32, %arg0 : i32, i32
  }
}

</mosaic_0001>

<llo_original>
// kernel: net3_forward.2
$region0: #{net3_forward.2}
  #allocation0 [shape = 'u32[]', space=smem, size = 0x4, offset = 0x4, fixed_abs, tag = 'smem constant byte address 0x4 - core index']
  #allocation1 [shape = 'u32[144,128]{1,0:T(1,128)}', space=vmem, size = 0x12000, scoped, tag = 'internal scratch']
  %s0 = inlined_call_operand.vmem [shape: f32[8,32], index: 0, kind: input, shape index: {}]
  %s1 = inlined_call_operand.vmem [shape: f32[32,16], index: 1, kind: input, shape index: {}]
  %s2 = inlined_call_operand.vmem [shape: f32[1,1,16], index: 2, kind: output, shape index: {0}]
  %s3 = inlined_call_operand.vmem [shape: f32[1,1,16], index: 3, kind: output, shape index: {1}]
  %4 = xla_tuple %s2, %s3
  %s5 = sld [smem:[#allocation0]]
  $region26: #{net3_forward.2} parent=0
    _
  %s7 = ssub.s32 1, %s5
  %s8 = scalar_select 0, %s7, %s5
  // Predicated region
  $region2: #{net3_forward.2} parent=0 // pred_check
    _
  $region3: #{net3_forward.2} parent=0 // pred_check_branch
    %10 = sbr.rel (0) target = $region5
  $region4: #{net3_forward.2} parent=0 // pred_region
    _
  $region5: #{net3_forward.2} parent=0 // pred_fallthru
    _
  // Predicated region
  $region6: #{net3_forward.2} parent=0 // pred_check
    _
  $region7: #{net3_forward.2} parent=0 // pred_check_branch
    %12 = sbr.rel (0) target = $region9
  $region8: #{net3_forward.2} parent=0 // pred_region
    _
  $region9: #{net3_forward.2} parent=0 // pred_fallthru
    _
  %v13 = vld [vmem:[%s0] sm:$0xff]
  %v14 = vld [vmem:[%s1] sm:$0xff]
  %v15 = vld [vmem:[%s1 + $0x8] sm:$0xff]
  %v16 = vld [vmem:[%s1 + $0x10] sm:$0xff]
  %v17 = vld [vmem:[%s1 + $0x18] sm:$0xff]
  %vm18 = vcmask 261120
  %v20 = vsel %vm18, %v13, 0
  %22 = vmatprep.subr.mxu0 0.0
  %23 = vmatpush1.msra.mxu0 0.0
  %24 = vmatprep.subr.mxu0 0.0
  %25 = vmatpush1.msra.mxu0 0.0
  %26 = vmatprep.subr.mxu0 0.0
  %27 = vmatpush1.msra.mxu0 0.0
  %28 = vmatprep.subr.mxu0 0.0
  %29 = vmatpush1.msra.mxu0 0.0
  %30 = vmatprep.subr.mxu0 0.0
  %31 = vmatpush1.msra.mxu0 0.0
  %32 = vmatprep.subr.mxu0 0.0
  %33 = vmatpush1.msra.mxu0 0.0
  %34 = vmatprep.subr.mxu0 0.0
  %35 = vmatpush1.msra.mxu0 0.0
  %36 = vmatprep.subr.mxu0 0.0
  %37 = vmatpush1.msra.mxu0 0.0
  %38 = vmatprep.subr.mxu0 0.0
  %39 = vmatpush1.msra.mxu0 0.0
  %40 = vmatprep.subr.mxu0 0.0
  %41 = vmatpush1.msra.mxu0 0.0
  %42 = vmatprep.subr.mxu0 0.0
  %43 = vmatpush1.msra.mxu0 0.0
  %44 = vmatprep.subr.mxu0 0.0
  %45 = vmatpush1.msra.mxu0 0.0
  %46 = vmatprep.subr.mxu0 0.0
  %47 = vmatpush1.msra.mxu0 %v17
  %48 = vmatprep.subr.mxu0 0.0
  %49 = vmatpush1.msra.mxu0 %v16
  %50 = vmatprep.subr.mxu0 0.0
  %51 = vmatpush1.msra.mxu0 %v15
  %52 = vmatprep.subr.mxu0 0.0
  %53 = vmatpush1.msra.mxu0 %v14
  %54 = vmatprep.subr.mxu0 0.0
  %55 = vmatpush2.msra.mxu0 0.0
  %56 = vmatprep.subr.mxu0 0.0
  %57 = vmatpush2.msra.mxu0 0.0
  %58 = vmatprep.subr.mxu0 0.0
  %59 = vmatpush2.msra.mxu0 0.0
  %60 = vmatprep.subr.mxu0 0.0
  %61 = vmatpush2.msra.mxu0 0.0
  %62 = vmatprep.subr.mxu0 0.0
  %63 = vmatpush2.msra.mxu0 0.0
  %64 = vmatprep.subr.mxu0 0.0
  %65 = vmatpush2.msra.mxu0 0.0
  %66 = vmatprep.subr.mxu0 0.0
  %67 = vmatpush2.msra.mxu0 0.0
  %68 = vmatprep.subr.mxu0 0.0
  %69 = vmatpush2.msra.mxu0 0.0
  %70 = vmatprep.subr.mxu0 0.0
  %71 = vmatpush2.msra.mxu0 0.0
  %72 = vmatprep.subr.mxu0 0.0
  %73 = vmatpush2.msra.mxu0 0.0
  %74 = vmatprep.subr.mxu0 0.0
  %75 = vmatpush2.msra.mxu0 0.0
  %76 = vmatprep.subr.mxu0 0.0
  %77 = vmatpush2.msra.mxu0 0.0
  %78 = vmatprep.subr.mxu0 0.0
  %79 = vmatpush2.msra.mxu0 0.0
  %80 = vmatprep.subr.mxu0 0.0
  %81 = vmatpush2.msra.mxu0 0.0
  %82 = vmatprep.subr.mxu0 0.0
  %83 = vmatpush2.msra.mxu0 0.0
  %84 = vmatprep.subr.mxu0 0.0
  %85 = vmatpush2.msra.mxu0 0.0
  %86 = vmatprep.mubr.f32.mxu0 0.0
  %87 = vmatmul.mubr.f32.gmra.mxu0 %v20
  %v88 = vpop.f32.mrf.mxu0
  %v89 = vadd.f32 0.0, %v88
  %v90 = vpop.f32.mrf.mxu0
  %91 = vdwg.mxu0
  %v92 = vmax.f32 %v89, 0.0
  %vm93 = vcmask 130048
  %v94 = vsel %vm93, %v92, 0.0
  %v95 = vrot.slane %v94, 4
  %v96 = vadd.f32 %v94, %v95
  %v97 = vrot.slane %v96, 2
  %v98 = vadd.f32 %v96, %v97
  %v99 = vrot.slane %v98, 1
  %v100 = vadd.f32 %v98, %v99
  %vm101 = vcmask 122880
  %102 = vst.msk [vmem:[%s2] sm:$0x1] %vm101, %v100
  %v103 = vmul.f32 %v92, %v92
  %v104 = vsel %vm93, %v103, 0.0
  %v105 = vrot.slane %v104, 4
  %v106 = vadd.f32 %v104, %v105
  %v107 = vrot.slane %v106, 2
  %v108 = vadd.f32 %v106, %v107
  %v109 = vrot.slane %v108, 1
  %v110 = vadd.f32 %v108, %v109
  %111 = vst.msk [vmem:[%s3] sm:$0x1] %vm101, %v110
  // Predicated region
  $region10: #{net3_forward.2} parent=0 // pred_check
    _
  $region11: #{net3_forward.2} parent=0 // pred_check_branch
    %113 = sbr.rel (0) target = $region13
  $region12: #{net3_forward.2} parent=0 // pred_region
    _
  $region13: #{net3_forward.2} parent=0 // pred_fallthru
    _
  // Predicated region
  $region14: #{net3_forward.2} parent=0 // pred_check
    _
  $region15: #{net3_forward.2} parent=0 // pred_check_branch
    %115 = sbr.rel (0) target = $region17
  $region16: #{net3_forward.2} parent=0 // pred_region
    _
  $region17: #{net3_forward.2} parent=0 // pred_fallthru
    _
  // Predicated region
  $region18: #{net3_forward.2} parent=0 // pred_check
    _
  $region19: #{net3_forward.2} parent=0 // pred_check_branch
    %117 = sbr.rel (0) target = $region21
  $region20: #{net3_forward.2} parent=0 // pred_region
    _
  $region21: #{net3_forward.2} parent=0 // pred_fallthru
    _
  // Predicated region
  $region22: #{net3_forward.2} parent=0 // pred_check
    _
  $region23: #{net3_forward.2} parent=0 // pred_check_branch
    %119 = sbr.rel (0) target = $region25
  $region24: #{net3_forward.2} parent=0 // pred_region
    _
  $region25: #{net3_forward.2} parent=0 // pred_fallthru
    _

// kernel: net3_forward.3
$region0: #{net3_forward.3}
  #allocation0 [shape = 'u32[]', space=smem, size = 0x4, offset = 0x4, fixed_abs, tag = 'smem constant byte address 0x4 - core index']
  #allocation1 [shape = 'u32[144,128]{1,0:T(1,128)}', space=vmem, size = 0x12000, scoped, tag = 'internal scratch']
  %s0 = inlined_call_operand.vmem [shape: f32[8,32], index: 0, kind: input, shape index: {}]
  %s1 = inlined_call_operand.vmem [shape: f32[32,16], index: 1, kind: input, shape index: {}]
  %s2 = inlined_call_operand.vmem [shape: f32[1,16], index: 2, kind: input, shape index: {}]
  %s3 = inlined_call_operand.vmem [shape: f32[1,16], index: 3, kind: input, shape index: {}]
  %s4 = inlined_call_operand.vmem [shape: f32[16,16], index: 4, kind: input, shape index: {}]
  %s5 = inlined_call_operand.vmem [shape: f32[1,16], index: 5, kind: input, shape index: {}]
  %s6 = inlined_call_operand.vmem [shape: f32[8,16], index: 6, kind: input, shape index: {}]
  %s7 = inlined_call_operand.vmem [shape: f32[8,8], index: 7, kind: output, shape index: {}]
  %s8 = sld [smem:[#allocation0]]
  $region38: #{net3_forward.3} parent=0
    _
  %s10 = ssub.s32 1, %s8
  %s11 = scalar_select 0, %s10, %s8
  // Predicated region
  $region2: #{net3_forward.3} parent=0 // pred_check
    _
  $region3: #{net3_forward.3} parent=0 // pred_check_branch
    %13 = sbr.rel (0) target = $region5
  $region4: #{net3_forward.3} parent=0 // pred_region
    _
  $region5: #{net3_forward.3} parent=0 // pred_fallthru
    _
  // Predicated region
  $region6: #{net3_forward.3} parent=0 // pred_check
    _
  $region7: #{net3_forward.3} parent=0 // pred_check_branch
    %15 = sbr.rel (0) target = $region9
  $region8: #{net3_forward.3} parent=0 // pred_region
    _
  $region9: #{net3_forward.3} parent=0 // pred_fallthru
    _
  // Predicated region
  $region10: #{net3_forward.3} parent=0 // pred_check
    _
  $region11: #{net3_forward.3} parent=0 // pred_check_branch
    %17 = sbr.rel (0) target = $region13
  $region12: #{net3_forward.3} parent=0 // pred_region
    _
  $region13: #{net3_forward.3} parent=0 // pred_fallthru
    _
  // Predicated region
  $region14: #{net3_forward.3} parent=0 // pred_check
    _
  $region15: #{net3_forward.3} parent=0 // pred_check_branch
    %19 = sbr.rel (0) target = $region17
  $region16: #{net3_forward.3} parent=0 // pred_region
    _
  $region17: #{net3_forward.3} parent=0 // pred_fallthru
    _
  // Predicated region
  $region18: #{net3_forward.3} parent=0 // pred_check
    _
  $region19: #{net3_forward.3} parent=0 // pred_check_branch
    %21 = sbr.rel (0) target = $region21
  $region20: #{net3_forward.3} parent=0 // pred_region
    _
  $region21: #{net3_forward.3} parent=0 // pred_fallthru
    _
  // Predicated region
  $region22: #{net3_forward.3} parent=0 // pred_check
    _
  $region23: #{net3_forward.3} parent=0 // pred_check_branch
    %23 = sbr.rel (0) target = $region25
  $region24: #{net3_forward.3} parent=0 // pred_region
    _
  $region25: #{net3_forward.3} parent=0 // pred_fallthru
    _
  // Predicated region
  $region26: #{net3_forward.3} parent=0 // pred_check
    _
  $region27: #{net3_forward.3} parent=0 // pred_check_branch
    %25 = sbr.rel (0) target = $region29
  $region28: #{net3_forward.3} parent=0 // pred_region
    _
  $region29: #{net3_forward.3} parent=0 // pred_fallthru
    _
  %v26 = vld [vmem:[%s0] sm:$0xff]
  %v27 = vld [vmem:[%s1] sm:$0xff]
  %v28 = vld [vmem:[%s1 + $0x8] sm:$0xff]
  %v29 = vld [vmem:[%s1 + $0x10] sm:$0xff]
  %v30 = vld [vmem:[%s1 + $0x18] sm:$0xff]
  %vm31 = vcmask 261120
  %v33 = vsel %vm31, %v26, 0
  %35 = vmatprep.subr.mxu0 0.0
  %36 = vmatpush1.msra.mxu0 0.0
  %37 = vmatprep.subr.mxu0 0.0
  %38 = vmatpush1.msra.mxu0 0.0
  %39 = vmatprep.subr.mxu0 0.0
  %40 = vmatpush1.msra.mxu0 0.0
  %41 = vmatprep.subr.mxu0 0.0
  %42 = vmatpush1.msra.mxu0 0.0
  %43 = vmatprep.subr.mxu0 0.0
  %44 = vmatpush1.msra.mxu0 0.0
  %45 = vmatprep.subr.mxu0 0.0
  %46 = vmatpush1.msra.mxu0 0.0
  %47 = vmatprep.subr.mxu0 0.0
  %48 = vmatpush1.msra.mxu0 0.0
  %49 = vmatprep.subr.mxu0 0.0
  %50 = vmatpush1.msra.mxu0 0.0
  %51 = vmatprep.subr.mxu0 0.0
  %52 = vmatpush1.msra.mxu0 0.0
  %53 = vmatprep.subr.mxu0 0.0
  %54 = vmatpush1.msra.mxu0 0.0
  %55 = vmatprep.subr.mxu0 0.0
  %56 = vmatpush1.msra.mxu0 0.0
  %57 = vmatprep.subr.mxu0 0.0
  %58 = vmatpush1.msra.mxu0 0.0
  %59 = vmatprep.subr.mxu0 0.0
  %60 = vmatpush1.msra.mxu0 %v30
  %61 = vmatprep.subr.mxu0 0.0
  %62 = vmatpush1.msra.mxu0 %v29
  %63 = vmatprep.subr.mxu0 0.0
  %64 = vmatpush1.msra.mxu0 %v28
  %65 = vmatprep.subr.mxu0 0.0
  %66 = vmatpush1.msra.mxu0 %v27
  %67 = vmatprep.subr.mxu0 0.0
  %68 = vmatpush2.msra.mxu0 0.0
  %69 = vmatprep.subr.mxu0 0.0
  %70 = vmatpush2.msra.mxu0 0.0
  %71 = vmatprep.subr.mxu0 0.0
  %72 = vmatpush2.msra.mxu0 0.0
  %73 = vmatprep.subr.mxu0 0.0
  %74 = vmatpush2.msra.mxu0 0.0
  %75 = vmatprep.subr.mxu0 0.0
  %76 = vmatpush2.msra.mxu0 0.0
  %77 = vmatprep.subr.mxu0 0.0
  %78 = vmatpush2.msra.mxu0 0.0
  %79 = vmatprep.subr.mxu0 0.0
  %80 = vmatpush2.msra.mxu0 0.0
  %81 = vmatprep.subr.mxu0 0.0
  %82 = vmatpush2.msra.mxu0 0.0
  %83 = vmatprep.subr.mxu0 0.0
  %84 = vmatpush2.msra.mxu0 0.0
  %85 = vmatprep.subr.mxu0 0.0
  %86 = vmatpush2.msra.mxu0 0.0
  %87 = vmatprep.subr.mxu0 0.0
  %88 = vmatpush2.msra.mxu0 0.0
  %89 = vmatprep.subr.mxu0 0.0
  %90 = vmatpush2.msra.mxu0 0.0
  %91 = vmatprep.subr.mxu0 0.0
  %92 = vmatpush2.msra.mxu0 0.0
  %93 = vmatprep.subr.mxu0 0.0
  %94 = vmatpush2.msra.mxu0 0.0
  %95 = vmatprep.subr.mxu0 0.0
  %96 = vmatpush2.msra.mxu0 0.0
  %97 = vmatprep.subr.mxu0 0.0
  %98 = vmatpush2.msra.mxu0 0.0
  %99 = vmatprep.mubr.f32.mxu0 0.0
  %100 = vmatmul.mubr.f32.gmra.mxu0 %v33
  %v101 = vpop.f32.mrf.mxu0
  %v102 = vadd.f32 0.0, %v101
  %v103 = vpop.f32.mrf.mxu0
  %104 = vdwg.mxu0
  %v105 = vmax.f32 %v102, 0.0
  %v106 = vld [vmem:[%s2] sm:$0x1]
  %v108 = vlaneseq
  %v109 = vshrl.u32 %v108, 7
  %v110 = vsub.s32 0, %v109
  %v111 = vrot.slane %v106, %v110
  %v113 = vmul.f32 %v105, %v111
  %v114 = vld [vmem:[%s3] sm:$0x1]
  %v116 = vlaneseq
  %v117 = vshrl.u32 %v116, 7
  %v118 = vsub.s32 0, %v117
  %v119 = vrot.slane %v114, %v118
  %v121 = vadd.f32 %v113, %v119
  %v122 = vmul.f32 %v121, %v121
  %vm123 = vcmask 130048
  %v124 = vsel %vm123, %v122, 0.0
  %125 = vadd.xlane.f32.xlu0 %v124
  %v126 = vpop.xlane.xlu0 %125
  %v127 = vld [vmem:[%s4] sm:$0xff]
  %v128 = vld [vmem:[%s4 + $0x8] sm:$0xff]
  %v130 = vsel %vm123, %v121, 0
  %132 = vmatprep.subr.mxu0 0.0
  %133 = vmatpush1.msra.mxu0 0.0
  %134 = vmatprep.subr.mxu0 0.0
  %135 = vmatpush1.msra.mxu0 0.0
  %136 = vmatprep.subr.mxu0 0.0
  %137 = vmatpush1.msra.mxu0 0.0
  %138 = vmatprep.subr.mxu0 0.0
  %139 = vmatpush1.msra.mxu0 0.0
  %140 = vmatprep.subr.mxu0 0.0
  %141 = vmatpush1.msra.mxu0 0.0
  %142 = vmatprep.subr.mxu0 0.0
  %143 = vmatpush1.msra.mxu0 0.0
  %144 = vmatprep.subr.mxu0 0.0
  %145 = vmatpush1.msra.mxu0 0.0
  %146 = vmatprep.subr.mxu0 0.0
  %147 = vmatpush1.msra.mxu0 0.0
  %148 = vmatprep.subr.mxu0 0.0
  %149 = vmatpush1.msra.mxu0 0.0
  %150 = vmatprep.subr.mxu0 0.0
  %151 = vmatpush1.msra.mxu0 0.0
  %152 = vmatprep.subr.mxu0 0.0
  %153 = vmatpush1.msra.mxu0 0.0
  %154 = vmatprep.subr.mxu0 0.0
  %155 = vmatpush1.msra.mxu0 0.0
  %156 = vmatprep.subr.mxu0 0.0
  %157 = vmatpush1.msra.mxu0 0.0
  %158 = vmatprep.subr.mxu0 0.0
  %159 = vmatpush1.msra.mxu0 0.0
  %160 = vmatprep.subr.mxu0 0.0
  %161 = vmatpush1.msra.mxu0 %v128
  %162 = vmatprep.subr.mxu0 0.0
  %163 = vmatpush1.msra.mxu0 %v127
  %164 = vmatprep.subr.mxu0 0.0
  %165 = vmatpush2.msra.mxu0 0.0
  %166 = vmatprep.subr.mxu0 0.0
  %167 = vmatpush2.msra.mxu0 0.0
  %168 = vmatprep.subr.mxu0 0.0
  %169 = vmatpush2.msra.mxu0 0.0
  %170 = vmatprep.subr.mxu0 0.0
  %171 = vmatpush2.msra.mxu0 0.0
  %172 = vmatprep.subr.mxu0 0.0
  %173 = vmatpush2.msra.mxu0 0.0
  %174 = vmatprep.subr.mxu0 0.0
  %175 = vmatpush2.msra.mxu0 0.0
  %176 = vmatprep.subr.mxu0 0.0
  %177 = vmatpush2.msra.mxu0 0.0
  %178 = vmatprep.subr.mxu0 0.0
  %179 = vmatpush2.msra.mxu0 0.0
  %180 = vmatprep.subr.mxu0 0.0
  %181 = vmatpush2.msra.mxu0 0.0
  %182 = vmatprep.subr.mxu0 0.0
  %183 = vmatpush2.msra.mxu0 0.0
  %184 = vmatprep.subr.mxu0 0.0
  %185 = vmatpush2.msra.mxu0 0.0
  %186 = vmatprep.subr.mxu0 0.0
  %187 = vmatpush2.msra.mxu0 0.0
  %188 = vmatprep.subr.mxu0 0.0
  %189 = vmatpush2.msra.mxu0 0.0
  %190 = vmatprep.subr.mxu0 0.0
  %191 = vmatpush2.msra.mxu0 0.0
  %192 = vmatprep.subr.mxu0 0.0
  %193 = vmatpush2.msra.mxu0 0.0
  %194 = vmatprep.subr.mxu0 0.0
  %195 = vmatpush2.msra.mxu0 0.0
  %196 = vmatprep.mubr.f32.mxu0 0.0
  %197 = vmatmul.mubr.f32.gmra.mxu0 %v130
  %v198 = vpop.f32.mrf.mxu0
  %v199 = vadd.f32 0.0, %v198
  %v200 = vpop.f32.mrf.mxu0
  %201 = vdwg.mxu0
  %v202 = vld [vmem:[%s5] sm:$0x1]
  %v204 = vlaneseq
  %v205 = vshrl.u32 %v204, 7
  %v206 = vsub.s32 0, %v205
  %v207 = vrot.slane %v202, %v206
  %v209 = vsub.f32 %v207, %v126
  %v210 = vadd.f32 %v209, %v199
  %v211 = vmax.f32 %v210, 0.0
  %v212 = vld [vmem:[%s6] sm:$0xff]
  %v214 = vsel %vm123, %v212, 0
  %v217 = vsel %vm123, %v211, 0
  %219 = vmatprep.subr.mxu0 0.0
  %220 = vmatpush1.xpose.msra.mxu0 0.0
  %221 = vmatprep.subr.mxu0 0.0
  %222 = vmatpush1.xpose.msra.mxu0 0.0
  %223 = vmatprep.subr.mxu0 0.0
  %224 = vmatpush1.xpose.msra.mxu0 0.0
  %225 = vmatprep.subr.mxu0 0.0
  %226 = vmatpush1.xpose.msra.mxu0 0.0
  %227 = vmatprep.subr.mxu0 0.0
  %228 = vmatpush1.xpose.msra.mxu0 0.0
  %229 = vmatprep.subr.mxu0 0.0
  %230 = vmatpush1.xpose.msra.mxu0 0.0
  %231 = vmatprep.subr.mxu0 0.0
  %232 = vmatpush1.xpose.msra.mxu0 0.0
  %233 = vmatprep.subr.mxu0 0.0
  %234 = vmatpush1.xpose.msra.mxu0 0.0
  %235 = vmatprep.subr.mxu0 0.0
  %236 = vmatpush1.xpose.msra.mxu0 0.0
  %237 = vmatprep.subr.mxu0 0.0
  %238 = vmatpush1.xpose.msra.mxu0 0.0
  %239 = vmatprep.subr.mxu0 0.0
  %240 = vmatpush1.xpose.msra.mxu0 0.0
  %241 = vmatprep.subr.mxu0 0.0
  %242 = vmatpush1.xpose.msra.mxu0 0.0
  %243 = vmatprep.subr.mxu0 0.0
  %244 = vmatpush1.xpose.msra.mxu0 0.0
  %245 = vmatprep.subr.mxu0 0.0
  %246 = vmatpush1.xpose.msra.mxu0 0.0
  %247 = vmatprep.subr.mxu0 0.0
  %248 = vmatpush1.xpose.msra.mxu0 0.0
  %249 = vmatprep.subr.mxu0 0.0
  %250 = vmatpush1.xpose.msra.mxu0 %v217
  %251 = vmatprep.subr.mxu0 0.0
  %252 = vmatpush2.xpose.msra.mxu0 0.0
  %253 = vmatprep.subr.mxu0 0.0
  %254 = vmatpush2.xpose.msra.mxu0 0.0
  %255 = vmatprep.subr.mxu0 0.0
  %256 = vmatpush2.xpose.msra.mxu0 0.0
  %257 = vmatprep.subr.mxu0 0.0
  %258 = vmatpush2.xpose.msra.mxu0 0.0
  %259 = vmatprep.subr.mxu0 0.0
  %260 = vmatpush2.xpose.msra.mxu0 0.0
  %261 = vmatprep.subr.mxu0 0.0
  %262 = vmatpush2.xpose.msra.mxu0 0.0
  %263 = vmatprep.subr.mxu0 0.0
  %264 = vmatpush2.xpose.msra.mxu0 0.0
  %265 = vmatprep.subr.mxu0 0.0
  %266 = vmatpush2.xpose.msra.mxu0 0.0
  %267 = vmatprep.subr.mxu0 0.0
  %268 = vmatpush2.xpose.msra.mxu0 0.0
  %269 = vmatprep.subr.mxu0 0.0
  %270 = vmatpush2.xpose.msra.mxu0 0.0
  %271 = vmatprep.subr.mxu0 0.0
  %272 = vmatpush2.xpose.msra.mxu0 0.0
  %273 = vmatprep.subr.mxu0 0.0
  %274 = vmatpush2.xpose.msra.mxu0 0.0
  %275 = vmatprep.subr.mxu0 0.0
  %276 = vmatpush2.xpose.msra.mxu0 0.0
  %277 = vmatprep.subr.mxu0 0.0
  %278 = vmatpush2.xpose.msra.mxu0 0.0
  %279 = vmatprep.subr.mxu0 0.0
  %280 = vmatpush2.xpose.msra.mxu0 0.0
  %281 = vmatprep.subr.mxu0 0.0
  %282 = vmatpush2.xpose.msra.mxu0 0.0
  %283 = vmatprep.mubr.f32.mxu0 0.0
  %284 = vmatmul.mubr.f32.gmra.mxu0 %v214
  %v285 = vpop.f32.mrf.mxu0
  %v286 = vadd.f32 0.0, %v285
  %v287 = vpop.f32.mrf.mxu0
  %288 = vdwg.mxu0
  %vm289 = vcmask 64512
  %290 = vst.msk [vmem:[%s7] sm:$0xff] %vm289, %v286
  // Predicated region
  $region30: #{net3_forward.3} parent=0 // pred_check
    _
  $region31: #{net3_forward.3} parent=0 // pred_check_branch
    %292 = sbr.rel (0) target = $region33
  $region32: #{net3_forward.3} parent=0 // pred_region
    _
  $region33: #{net3_forward.3} parent=0 // pred_fallthru
    _
  // Predicated region
  $region34: #{net3_forward.3} parent=0 // pred_check
    _
  $region35: #{net3_forward.3} parent=0 // pred_check_branch
    %294 = sbr.rel (0) target = $region37
  $region36: #{net3_forward.3} parent=0 // pred_region
    _
  $region37: #{net3_forward.3} parent=0 // pred_fallthru
    _

</llo_original>
